<compile_context>
chip_gen: v7x
topology: tpu7x:2x2x1
jax: 0.10.0
libtpu: 0.0.40
codegen_flags: <defaults>
</compile_context>

<pallas_src>
import jax
import jax.numpy as jnp
from jax.experimental import pallas as pl
from jax.experimental.pallas import tpu as pltpu


def rnn_model_kernel(x_ref, h_ref,
                     w1_ref, b1_ref,
                     wih_ref, whh_ref, bi_ref, bhn_ref,
                     w2_ref, b2_ref,
                     q_ref, h_out_ref):
    """One RNNModel step for a (tile_B, ...) batch tile.

    fc1+ReLU -> fused-gate GRUCell -> fc2 (output lane-padded).
    MXU matmuls accumulate in f32; gate elementwise math stays in f32
    (v5e VPU/EUP have no bf16 path).
    """
    H = whh_ref.shape[0]
    cdt = w1_ref.dtype            # MXU input dtype (f32 or bf16 weights)

    x = x_ref[...]
    h = h_ref[...].astype(jnp.float32)

    # fc1 + ReLU
    x1 = jnp.dot(x.astype(cdt), w1_ref[...],
                 preferred_element_type=jnp.float32) + b1_ref[...]
    x1 = jnp.maximum(x1, 0.0)

    # GRUCell with fused (H, 3H) gate matmuls; columns ordered [r | z | n].
    # r/z input+hidden biases are pre-summed into bi; b_hn stays separate
    # because it must sit inside r * (...).
    gi = jnp.dot(x1.astype(cdt), wih_ref[...],
                 preferred_element_type=jnp.float32) + bi_ref[...]
    gh = jnp.dot(h.astype(cdt), whh_ref[...],
                 preferred_element_type=jnp.float32)

    r = jax.nn.sigmoid(gi[:, 0:H] + gh[:, 0:H])
    z = jax.nn.sigmoid(gi[:, H:2 * H] + gh[:, H:2 * H])
    n = jnp.tanh(gi[:, 2 * H:3 * H] + r * (gh[:, 2 * H:3 * H] + bhn_ref[...]))
    h_new = (1.0 - z) * n + z * h

    # fc2 (n_actions zero-padded to a lane-dense multiple of 128).
    q = jnp.dot(h_new.astype(cdt), w2_ref[...],
                preferred_element_type=jnp.float32) + b2_ref[...]

    q_ref[...] = q.astype(q_ref.dtype)
    h_out_ref[...] = h_new.astype(h_out_ref.dtype)


def init_params(key, input_shape, n_actions, rnn_hidden_dim):
    """Deterministic synthetic parameters with PyTorch-equivalent shapes."""
    ks = jax.random.split(key, 8)
    H = rnn_hidden_dim

    def u(k, shape, fan_in):
        bound = 1.0 / jnp.sqrt(jnp.float32(fan_in))
        return jax.random.uniform(k, shape, jnp.float32, -bound, bound)

    return {
        "fc1.weight": u(ks[0], (H, input_shape), input_shape),   # (H, in)
        "fc1.bias":   u(ks[1], (H,), input_shape),
        "rnn.weight_ih": u(ks[2], (3 * H, H), H),                # rows: [r, z, n]
        "rnn.weight_hh": u(ks[3], (3 * H, H), H),
        "rnn.bias_ih":   u(ks[4], (3 * H,), H),
        "rnn.bias_hh":   u(ks[5], (3 * H,), H),
        "fc2.weight": u(ks[6], (n_actions, H), H),               # (A, H)
        "fc2.bias":   u(ks[7], (n_actions,), H),
    }


def prepare_params(params, rnn_hidden_dim, *, weights_dtype=jnp.float32):
    """One-time re-layout of PyTorch-shaped params into the kernel layout.

    Done once at init (not per forward call): transposes, gate-weight fusion,
    bias pre-combination and lane padding of the fc2 output dimension.
    """
    H = rnn_hidden_dim
    A = params["fc2.weight"].shape[0]
    A_pad = ((A + 127) // 128) * 128
    f32 = jnp.float32

    w1 = params["fc1.weight"].T.astype(weights_dtype)             # (in, H)
    b1 = params["fc1.bias"].reshape(1, H).astype(f32)

    wih = params["rnn.weight_ih"].T.astype(weights_dtype)         # (H, 3H) [r|z|n]
    whh = params["rnn.weight_hh"].T.astype(weights_dtype)         # (H, 3H)
    b_ih = params["rnn.bias_ih"].astype(f32)
    b_hh = params["rnn.bias_hh"].astype(f32)
    bi = jnp.concatenate([b_ih[0:H] + b_hh[0:H],
                          b_ih[H:2 * H] + b_hh[H:2 * H],
                          b_ih[2 * H:3 * H]]).reshape(1, 3 * H)
    bhn = b_hh[2 * H:3 * H].reshape(1, H)

    w2 = jnp.zeros((H, A_pad), weights_dtype).at[:, :A].set(
        params["fc2.weight"].T.astype(weights_dtype))
    b2 = jnp.zeros((1, A_pad), f32).at[:, :A].set(params["fc2.bias"].astype(f32))

    return {"w1": w1, "b1": b1, "wih": wih, "whh": whh, "bi": bi, "bhn": bhn,
            "w2": w2, "b2": b2, "n_actions": A, "hidden": H}


def rnn_model_forward(inputs, hidden_state, prepared, *, batch_tile=256):
    """Equivalent of RNNModel.forward: returns (q, h)."""
    H = prepared["hidden"]
    A = prepared["n_actions"]
    A_pad = prepared["w2"].shape[1]
    B, IN = inputs.shape

    x = inputs.astype(jnp.float32)
    h_in = hidden_state.reshape(-1, H).astype(jnp.float32)

    # Pad batch to a sublane multiple (8) and pick the batch tile.
    if B <= batch_tile:
        B_pad = -(-B // 8) * 8
        tile = B_pad
    else:
        B_pad = -(-B // batch_tile) * batch_tile
        tile = batch_tile
    if B_pad != B:
        x = jnp.pad(x, ((0, B_pad - B), (0, 0)))
        h_in = jnp.pad(h_in, ((0, B_pad - B), (0, 0)))

    grid = (B_pad // tile,)

    def batch_block(last):
        return pl.BlockSpec((tile, last), lambda i: (i, 0))

    def resident(arr):
        # Full-array block with a constant index -> DMA'd once, stays resident
        # in VMEM across batch-tile grid steps.
        return pl.BlockSpec(arr.shape, lambda i: (0, 0))

    weight_args = (prepared["w1"], prepared["b1"], prepared["wih"],
                   prepared["whh"], prepared["bi"], prepared["bhn"],
                   prepared["w2"], prepared["b2"])

    q_pad, h_out = pl.pallas_call(
        rnn_model_kernel,
        grid=grid,
        in_specs=[batch_block(IN), batch_block(H)]
                 + [resident(w) for w in weight_args],
        out_specs=(pl.BlockSpec((tile, A_pad), lambda i: (i, 0)),
                   pl.BlockSpec((tile, H), lambda i: (i, 0))),
        out_shape=(jax.ShapeDtypeStruct((B_pad, A_pad), jnp.float32),
                   jax.ShapeDtypeStruct((B_pad, H), jnp.float32)),
        compiler_params=pltpu.CompilerParams(
            # Batch tiles are independent -> shard across v7x's 2 TensorCores.
            dimension_semantics=("parallel",)),
    )(x, h_in, *weight_args)

    return q_pad[:B, :A], h_out[:B, :]


def rnn_model_forward_ref(inputs, hidden_state, params, rnn_hidden_dim):
    """Pure-JAX reference mirroring PyTorch semantics (for validation)."""
    H = rnn_hidden_dim
    x = jnp.maximum(inputs @ params["fc1.weight"].T + params["fc1.bias"], 0.0)
    h = hidden_state.reshape(-1, H)
    gi = x @ params["rnn.weight_ih"].T + params["rnn.bias_ih"]
    gh = h @ params["rnn.weight_hh"].T + params["rnn.bias_hh"]
    r = jax.nn.sigmoid(gi[:, 0:H] + gh[:, 0:H])
    z = jax.nn.sigmoid(gi[:, H:2 * H] + gh[:, H:2 * H])
    n = jnp.tanh(gi[:, 2 * H:] + r * gh[:, 2 * H:])
    h_new = (1.0 - z) * n + z * h
    q = h_new @ params["fc2.weight"].T + params["fc2.bias"]
    return q, h_new


if __name__ == "__main__":
    INPUT_SHAPE = 32      # agent observation dim
    N_ACTIONS = 16
    HIDDEN = 64           # rnn_hidden_dim
    BATCH = 32            # all agents x parallel envs batched into one call

    key = jax.random.PRNGKey(0)
    k_param, k_x, k_h = jax.random.split(key, 3)

    params = init_params(k_param, INPUT_SHAPE, N_ACTIONS, HIDDEN)
    inputs = jax.random.normal(k_x, (BATCH, INPUT_SHAPE), jnp.float32)
    hidden_state = jax.random.normal(k_h, (BATCH, HIDDEN), jnp.float32)

    q_ref, h_ref = rnn_model_forward_ref(inputs, hidden_state, params, HIDDEN)

    # --- f32 weights path (exact check) ---
    prepared_f32 = prepare_params(params, HIDDEN, weights_dtype=jnp.float32)
    q, h = rnn_model_forward(inputs, hidden_state, prepared_f32)
    q = jax.block_until_ready(q)
    h = jax.block_until_ready(h)
    assert q.shape == (BATCH, N_ACTIONS) and h.shape == (BATCH, HIDDEN)
    assert jnp.allclose(q, q_ref, atol=1e-5, rtol=1e-5)
    assert jnp.allclose(h, h_ref, atol=1e-5, rtol=1e-5)

    # --- bf16 weights path (v6e/v7x MXU + halved weight DMA), f32 accumulate ---
    prepared_bf16 = prepare_params(params, HIDDEN, weights_dtype=jnp.bfloat16)
    q_bf, h_bf = rnn_model_forward(inputs, hidden_state, prepared_bf16)
    q_bf = jax.block_until_ready(q_bf)
    h_bf = jax.block_until_ready(h_bf)
    assert jnp.allclose(q_bf, q_ref, atol=1e-1, rtol=1e-1)
    assert jnp.allclose(h_bf, h_ref, atol=1e-1, rtol=1e-1)

    print("KERNEL_OK")
</pallas_src>

<mosaic_0001>
module attributes {stable_mosaic.version = 11 : i64} {
  func.func @rnn_model_kernel(%arg0: i32, %arg1: memref<32x32xf32, #tpu.memory_space<vmem>>, %arg2: memref<32x64xf32, #tpu.memory_space<vmem>>, %arg3: memref<32x64xf32, #tpu.memory_space<vmem>>, %arg4: memref<1x64xf32, #tpu.memory_space<vmem>>, %arg5: memref<64x192xf32, #tpu.memory_space<vmem>>, %arg6: memref<64x192xf32, #tpu.memory_space<vmem>>, %arg7: memref<1x192xf32, #tpu.memory_space<vmem>>, %arg8: memref<1x64xf32, #tpu.memory_space<vmem>>, %arg9: memref<64x128xf32, #tpu.memory_space<vmem>>, %arg10: memref<1x128xf32, #tpu.memory_space<vmem>>, %arg11: memref<32x128xf32, #tpu.memory_space<vmem>>, %arg12: memref<32x64xf32, #tpu.memory_space<vmem>>) attributes {dimension_semantics = [#tpu.dimension_semantics<parallel>], iteration_bounds = array<i64: 1>, scalar_prefetch = 0 : i64, scratch_operands = 0 : i64, tpu.core_type = #tpu.core_type<tc>, window_params = [{transform_indices = @transform_0, window_bounds = array<i64: 32, 32>}, {transform_indices = @transform_1, window_bounds = array<i64: 32, 64>}, {pipeline_mode = #tpu.pipeline_mode<synchronous>, transform_indices = @transform_2, window_bounds = array<i64: 32, 64>}, {pipeline_mode = #tpu.pipeline_mode<synchronous>, transform_indices = @transform_3, window_bounds = array<i64: 1, 64>}, {pipeline_mode = #tpu.pipeline_mode<synchronous>, transform_indices = @transform_4, window_bounds = array<i64: 64, 192>}, {pipeline_mode = #tpu.pipeline_mode<synchronous>, transform_indices = @transform_5, window_bounds = array<i64: 64, 192>}, {pipeline_mode = #tpu.pipeline_mode<synchronous>, transform_indices = @transform_6, window_bounds = array<i64: 1, 192>}, {pipeline_mode = #tpu.pipeline_mode<synchronous>, transform_indices = @transform_7, window_bounds = array<i64: 1, 64>}, {pipeline_mode = #tpu.pipeline_mode<synchronous>, transform_indices = @transform_8, window_bounds = array<i64: 64, 128>}, {pipeline_mode = #tpu.pipeline_mode<synchronous>, transform_indices = @transform_9, window_bounds = array<i64: 1, 128>}, {transform_indices = @transform_10, window_bounds = array<i64: 32, 128>}, {transform_indices = @transform_11, window_bounds = array<i64: 32, 64>}]} {
    %c0 = arith.constant 0 : index
    %c0_0 = arith.constant 0 : index
    %0 = vector.load %arg1[%c0, %c0_0] : memref<32x32xf32, #tpu.memory_space<vmem>>, vector<32x32xf32>
    %c0_1 = arith.constant 0 : index
    %c0_2 = arith.constant 0 : index
    %1 = vector.load %arg2[%c0_1, %c0_2] : memref<32x64xf32, #tpu.memory_space<vmem>>, vector<32x64xf32>
    %c0_3 = arith.constant 0 : index
    %c0_4 = arith.constant 0 : index
    %2 = vector.load %arg3[%c0_3, %c0_4] : memref<32x64xf32, #tpu.memory_space<vmem>>, vector<32x64xf32>
    %cst = arith.constant dense<0.000000e+00> : vector<32x64xf32>
    %3 = tpu.matmul %0, %2, %cst {dimension_numbers = #tpu.dot_dimension_numbers<[1], [0], [0], [1], [0, 0, 1, 1], [], []>} : vector<32x32xf32>, vector<32x64xf32>, vector<32x64xf32> -> vector<32x64xf32>
    %c0_5 = arith.constant 0 : index
    %c0_6 = arith.constant 0 : index
    %4 = vector.load %arg4[%c0_5, %c0_6] : memref<1x64xf32, #tpu.memory_space<vmem>>, vector<1x64xf32>
    %5 = vector.broadcast %4 : vector<1x64xf32> to vector<32x64xf32>
    %6 = arith.addf %3, %5 : vector<32x64xf32>
    %cst_7 = arith.constant 0.000000e+00 : f32
    %7 = vector.broadcast %cst_7 : f32 to vector<32x64xf32>
    %8 = arith.maximumf %6, %7 : vector<32x64xf32>
    %c0_8 = arith.constant 0 : index
    %c0_9 = arith.constant 0 : index
    %9 = vector.load %arg5[%c0_8, %c0_9] : memref<64x192xf32, #tpu.memory_space<vmem>>, vector<64x192xf32>
    %cst_10 = arith.constant dense<0.000000e+00> : vector<32x192xf32>
    %10 = tpu.matmul %8, %9, %cst_10 {dimension_numbers = #tpu.dot_dimension_numbers<[1], [0], [0], [1], [0, 0, 1, 1], [], []>} : vector<32x64xf32>, vector<64x192xf32>, vector<32x192xf32> -> vector<32x192xf32>
    %c0_11 = arith.constant 0 : index
    %c0_12 = arith.constant 0 : index
    %11 = vector.load %arg7[%c0_11, %c0_12] : memref<1x192xf32, #tpu.memory_space<vmem>>, vector<1x192xf32>
    %12 = vector.broadcast %11 : vector<1x192xf32> to vector<32x192xf32>
    %13 = arith.addf %10, %12 : vector<32x192xf32>
    %c0_13 = arith.constant 0 : index
    %c0_14 = arith.constant 0 : index
    %14 = vector.load %arg6[%c0_13, %c0_14] : memref<64x192xf32, #tpu.memory_space<vmem>>, vector<64x192xf32>
    %cst_15 = arith.constant dense<0.000000e+00> : vector<32x192xf32>
    %15 = tpu.matmul %1, %14, %cst_15 {dimension_numbers = #tpu.dot_dimension_numbers<[1], [0], [0], [1], [0, 0, 1, 1], [], []>} : vector<32x64xf32>, vector<64x192xf32>, vector<32x192xf32> -> vector<32x192xf32>
    %16 = vector.extract_strided_slice %13 {offsets = [0, 0], sizes = [32, 64], strides = [1, 1]} : vector<32x192xf32> to vector<32x64xf32>
    %17 = vector.extract_strided_slice %15 {offsets = [0, 0], sizes = [32, 64], strides = [1, 1]} : vector<32x192xf32> to vector<32x64xf32>
    %18 = arith.addf %16, %17 : vector<32x64xf32>
    %19 = arith.negf %18 : vector<32x64xf32>
    %20 = math.exp %19 : vector<32x64xf32>
    %cst_16 = arith.constant 1.000000e+00 : f32
    %21 = vector.broadcast %cst_16 : f32 to vector<32x64xf32>
    %22 = arith.addf %21, %20 : vector<32x64xf32>
    %23 = arith.divf %21, %22 : vector<32x64xf32>
    %24 = vector.extract_strided_slice %13 {offsets = [0, 64], sizes = [32, 64], strides = [1, 1]} : vector<32x192xf32> to vector<32x64xf32>
    %25 = vector.extract_strided_slice %15 {offsets = [0, 64], sizes = [32, 64], strides = [1, 1]} : vector<32x192xf32> to vector<32x64xf32>
    %26 = arith.addf %24, %25 : vector<32x64xf32>
    %27 = arith.negf %26 : vector<32x64xf32>
    %28 = math.exp %27 : vector<32x64xf32>
    %cst_17 = arith.constant 1.000000e+00 : f32
    %29 = vector.broadcast %cst_17 : f32 to vector<32x64xf32>
    %30 = arith.addf %29, %28 : vector<32x64xf32>
    %31 = arith.divf %29, %30 : vector<32x64xf32>
    %32 = vector.extract_strided_slice %13 {offsets = [0, 128], sizes = [32, 64], strides = [1, 1]} : vector<32x192xf32> to vector<32x64xf32>
    %33 = vector.extract_strided_slice %15 {offsets = [0, 128], sizes = [32, 64], strides = [1, 1]} : vector<32x192xf32> to vector<32x64xf32>
    %c0_18 = arith.constant 0 : index
    %c0_19 = arith.constant 0 : index
    %34 = vector.load %arg8[%c0_18, %c0_19] : memref<1x64xf32, #tpu.memory_space<vmem>>, vector<1x64xf32>
    %35 = vector.broadcast %34 : vector<1x64xf32> to vector<32x64xf32>
    %36 = arith.addf %33, %35 : vector<32x64xf32>
    %37 = arith.mulf %23, %36 : vector<32x64xf32>
    %38 = arith.addf %32, %37 : vector<32x64xf32>
    %39 = math.tanh %38 : vector<32x64xf32>
    %cst_20 = arith.constant 1.000000e+00 : f32
    %40 = vector.broadcast %cst_20 : f32 to vector<32x64xf32>
    %41 = arith.subf %40, %31 : vector<32x64xf32>
    %42 = arith.mulf %41, %39 : vector<32x64xf32>
    %43 = arith.mulf %31, %1 : vector<32x64xf32>
    %44 = arith.addf %42, %43 : vector<32x64xf32>
    %c0_21 = arith.constant 0 : index
    %c0_22 = arith.constant 0 : index
    %45 = vector.load %arg9[%c0_21, %c0_22] : memref<64x128xf32, #tpu.memory_space<vmem>>, vector<64x128xf32>
    %cst_23 = arith.constant dense<0.000000e+00> : vector<32x128xf32>
    %46 = tpu.matmul %44, %45, %cst_23 {dimension_numbers = #tpu.dot_dimension_numbers<[1], [0], [0], [1], [0, 0, 1, 1], [], []>} : vector<32x64xf32>, vector<64x128xf32>, vector<32x128xf32> -> vector<32x128xf32>
    %c0_24 = arith.constant 0 : index
    %c0_25 = arith.constant 0 : index
    %47 = vector.load %arg10[%c0_24, %c0_25] : memref<1x128xf32, #tpu.memory_space<vmem>>, vector<1x128xf32>
    %48 = vector.broadcast %47 : vector<1x128xf32> to vector<32x128xf32>
    %49 = arith.addf %46, %48 : vector<32x128xf32>
    %c0_26 = arith.constant 0 : index
    %c0_27 = arith.constant 0 : index
    %50 = vector.load %arg11[%c0_26, %c0_27] : memref<32x128xf32, #tpu.memory_space<vmem>>, vector<32x128xf32>
    tpu.vector_store %arg11[%c0_26, %c0_27], %49 {strides = array<i32>} : memref<32x128xf32, #tpu.memory_space<vmem>>, vector<32x128xf32>,
    %c0_28 = arith.constant 0 : index
    %c0_29 = arith.constant 0 : index
    %51 = vector.load %arg12[%c0_28, %c0_29] : memref<32x64xf32, #tpu.memory_space<vmem>>, vector<32x64xf32>
    tpu.vector_store %arg12[%c0_28, %c0_29], %44 {strides = array<i32>} : memref<32x64xf32, #tpu.memory_space<vmem>>, vector<32x64xf32>,
    return
  }
  func.func @transform_0(%arg0: i32) -> (i32, i32) {
    %c0_i32 = arith.constant 0 : i32
    %c0_i32_0 = arith.constant 0 : i32
    return %arg0, %c0_i32 : i32, i32
  }
  func.func @transform_1(%arg0: i32) -> (i32, i32) {
    %c0_i32 = arith.constant 0 : i32
    %c0_i32_0 = arith.constant 0 : i32
    return %arg0, %c0_i32 : i32, i32
  }
  func.func @transform_2(%arg0: i32) -> (i32, i32) {
    %c0_i32 = arith.constant 0 : i32
    %c0_i32_0 = arith.constant 0 : i32
    %c0_i32_1 = arith.constant 0 : i32
    return %c0_i32, %c0_i32_0 : i32, i32
  }
  func.func @transform_3(%arg0: i32) -> (i32, i32) {
    %c0_i32 = arith.constant 0 : i32
    %c0_i32_0 = arith.constant 0 : i32
    %c0_i32_1 = arith.constant 0 : i32
    return %c0_i32, %c0_i32_0 : i32, i32
  }
  func.func @transform_4(%arg0: i32) -> (i32, i32) {
    %c0_i32 = arith.constant 0 : i32
    %c0_i32_0 = arith.constant 0 : i32
    %c0_i32_1 = arith.constant 0 : i32
    return %c0_i32, %c0_i32_0 : i32, i32
  }
  func.func @transform_5(%arg0: i32) -> (i32, i32) {
    %c0_i32 = arith.constant 0 : i32
    %c0_i32_0 = arith.constant 0 : i32
    %c0_i32_1 = arith.constant 0 : i32
    return %c0_i32, %c0_i32_0 : i32, i32
  }
  func.func @transform_6(%arg0: i32) -> (i32, i32) {
    %c0_i32 = arith.constant 0 : i32
    %c0_i32_0 = arith.constant 0 : i32
    %c0_i32_1 = arith.constant 0 : i32
    return %c0_i32, %c0_i32_0 : i32, i32
  }
  func.func @transform_7(%arg0: i32) -> (i32, i32) {
    %c0_i32 = arith.constant 0 : i32
    %c0_i32_0 = arith.constant 0 : i32
    %c0_i32_1 = arith.constant 0 : i32
    return %c0_i32, %c0_i32_0 : i32, i32
  }
  func.func @transform_8(%arg0: i32) -> (i32, i32) {
    %c0_i32 = arith.constant 0 : i32
    %c0_i32_0 = arith.constant 0 : i32
    %c0_i32_1 = arith.constant 0 : i32
    return %c0_i32, %c0_i32_0 : i32, i32
  }
  func.func @transform_9(%arg0: i32) -> (i32, i32) {
    %c0_i32 = arith.constant 0 : i32
    %c0_i32_0 = arith.constant 0 : i32
    %c0_i32_1 = arith.constant 0 : i32
    return %c0_i32, %c0_i32_0 : i32, i32
  }
  func.func @transform_10(%arg0: i32) -> (i32, i32) {
    %c0_i32 = arith.constant 0 : i32
    %c0_i32_0 = arith.constant 0 : i32
    return %arg0, %c0_i32 : i32, i32
  }
  func.func @transform_11(%arg0: i32) -> (i32, i32) {
    %c0_i32 = arith.constant 0 : i32
    %c0_i32_0 = arith.constant 0 : i32
    return %arg0, %c0_i32 : i32, i32
  }
}

</mosaic_0001>

<llo_original>
// kernel: tpu_custom_call.1
$region0: #{tpu_custom_call.1}
  #allocation0 [shape = 'u32[]', space=smem, size = 0x4, offset = 0x4, fixed_abs, tag = 'smem constant byte address 0x4 - core index']
  #allocation1 [shape = 'u32[144,128]{1,0:T(1,128)}', space=vmem, size = 0x12000, scoped, tag = 'internal scratch']
  %s0 = inlined_call_operand.hbm [shape: f32[32,32], index: 0, kind: input, shape index: {}]
  %s1 = inlined_call_operand.hbm [shape: f32[32,64], index: 1, kind: input, shape index: {}]
  %s2 = inlined_call_operand.hbm [shape: f32[32,64], index: 2, kind: input, shape index: {}]
  %s3 = inlined_call_operand.vmem [shape: f32[1,64], index: 3, kind: input, shape index: {}]
  %s4 = inlined_call_operand.hbm [shape: f32[64,192], index: 4, kind: input, shape index: {}]
  %s5 = inlined_call_operand.hbm [shape: f32[64,192], index: 5, kind: input, shape index: {}]
  %s6 = inlined_call_operand.vmem [shape: f32[1,192], index: 6, kind: input, shape index: {}]
  %s7 = inlined_call_operand.vmem [shape: f32[1,64], index: 7, kind: input, shape index: {}]
  %s8 = inlined_call_operand.hbm [shape: f32[64,128], index: 8, kind: input, shape index: {}]
  %s9 = inlined_call_operand.vmem [shape: f32[1,128], index: 9, kind: input, shape index: {}]
  %s10 = inlined_call_operand.hbm [shape: f32[32,128], index: 10, kind: output, shape index: {0}]
  %s11 = inlined_call_operand.hbm [shape: f32[32,64], index: 11, kind: output, shape index: {1}]
  %12 = xla_tuple %s10, %s11
  %s13 = sld [smem:[#allocation0]]
  $region82: #{tpu_custom_call.1} parent=0
    _
  %s15 = ssub.s32 1, %s13
  %s16 = scalar_select 0, %s15, %s13
  $region1: #{tpu_custom_call.1} parent=0
    #allocation2 [shape = 'u8[16384]{0}', space=vmem, size = 0x4000, scoped, tag = 'input window, operand 0, single buffered']
    #allocation3 [shape = 's32[1]{0}', space=sflag, size = 0x4, scoped, tag = 'scoped memory for tpu_custom_call.1']
    #allocation4 [shape = 's32[1]{0}', space=sflag, size = 0x4, scoped, tag = 'scoped memory for tpu_custom_call.1']
    #allocation5 [shape = 'u8[16384]{0}', space=vmem, size = 0x4000, scoped, tag = 'input window, operand 1, single buffered']
    #allocation6 [shape = 's32[1]{0}', space=sflag, size = 0x4, scoped, tag = 'scoped memory for tpu_custom_call.1']
    #allocation7 [shape = 'u8[16384]{0}', space=vmem, size = 0x4000, scoped, tag = 'input window, operand 2, single buffered']
    #allocation8 [shape = 'u8[65536]{0}', space=vmem, size = 0x10000, scoped, tag = 'input window, operand 4, single buffered']
    #allocation9 [shape = 's32[1]{0}', space=sflag, size = 0x4, scoped, tag = 'scoped memory for tpu_custom_call.1']
    #allocation10 [shape = 'u8[65536]{0}', space=vmem, size = 0x10000, scoped, tag = 'input window, operand 5, single buffered']
    #allocation11 [shape = 'u8[32768]{0}', space=vmem, size = 0x8000, scoped, tag = 'input window, operand 8, single buffered']
    #allocation12 [shape = 's32[1]{0}', space=sflag, size = 0x4, scoped, tag = 'scoped memory for tpu_custom_call.1']
    #allocation13 [shape = 'u8[16384]{0}', space=vmem, size = 0x4000, scoped, tag = 'output window, operand 0, single buffered']
    #allocation14 [shape = 'u8[16384]{0}', space=vmem, size = 0x4000, scoped, tag = 'output window, operand 1, single buffered']
    #allocation15 [shape = 's32[1]{0}', space=sflag, size = 0x4, scoped, tag = 'scoped memory for tpu_custom_call.1']
    %17 = vsyncpa [#allocation3], 0
    %18 = vsyncpa [#allocation6], 0
    %19 = vsyncpa [#allocation9], 0
    %20 = vsyncpa [#allocation12], 0
    %21 = vsyncpa [#allocation4], 0
    %22 = vsyncpa [#allocation15], 0
    // Predicated region
    $region2: #{tpu_custom_call.1} parent=1 // pred_check
      _
    $region3: #{tpu_custom_call.1} parent=1 // pred_check_branch
      %24 = sbr.rel (0) target = $region5
    $region4: #{tpu_custom_call.1} parent=1 // pred_region
      %s26 = ssub.s32 512, 512
      %27 = vsyncadd [#allocation3], %s26
      %s28 = sshll.u32 [#allocation2], 4
      %s29 = int_to_ptr.vmem [resolvable:$true] %s28
      %34 = dma.hbm_to_vmem [thread:$0]  %s0, 512, %s29, [#allocation3], 128, 128, 8
    $region5: #{tpu_custom_call.1} parent=1 // pred_fallthru
      _
    // Predicated region
    $region6: #{tpu_custom_call.1} parent=1 // pred_check
      _
    $region7: #{tpu_custom_call.1} parent=1 // pred_check_branch
      %36 = sbr.rel (0) target = $region9
    $region8: #{tpu_custom_call.1} parent=1 // pred_region
      %s38 = ssub.s32 512, 512
      %39 = vsyncadd [#allocation6], %s38
      %s40 = sshll.u32 [#allocation5], 4
      %s41 = int_to_ptr.vmem [resolvable:$true] %s40
      %46 = dma.hbm_to_vmem [thread:$0]  %s1, 512, %s41, [#allocation6], 128, 128, 8
    $region9: #{tpu_custom_call.1} parent=1 // pred_fallthru
      _
    // Predicated region
    $region10: #{tpu_custom_call.1} parent=1 // pred_check
      _
    $region11: #{tpu_custom_call.1} parent=1 // pred_check_branch
      %48 = sbr.rel (0) target = $region13
    $region12: #{tpu_custom_call.1} parent=1 // pred_region
      %s50 = ssub.s32 512, 512
      %51 = vsyncadd [#allocation6], %s50
      %s52 = sshll.u32 [#allocation7], 4
      %s53 = int_to_ptr.vmem [resolvable:$true] %s52
      %58 = dma.hbm_to_vmem [thread:$0]  %s2, 512, %s53, [#allocation6], 128, 128, 8
    $region13: #{tpu_custom_call.1} parent=1 // pred_fallthru
      _
    // Predicated region
    $region14: #{tpu_custom_call.1} parent=1 // pred_check
      _
    $region15: #{tpu_custom_call.1} parent=1 // pred_check_branch
      %60 = sbr.rel (0) target = $region17
    $region16: #{tpu_custom_call.1} parent=1 // pred_region
      _
    $region17: #{tpu_custom_call.1} parent=1 // pred_fallthru
      _
    // Predicated region
    $region18: #{tpu_custom_call.1} parent=1 // pred_check
      _
    $region19: #{tpu_custom_call.1} parent=1 // pred_check_branch
      %62 = sbr.rel (0) target = $region21
    $region20: #{tpu_custom_call.1} parent=1 // pred_region
      %s64 = ssub.s32 2048, 2048
      %65 = vsyncadd [#allocation9], %s64
      %s66 = sshll.u32 [#allocation8], 4
      %s67 = int_to_ptr.vmem [resolvable:$true] %s66
      %72 = dma.hbm_to_vmem [thread:$0]  %s4, 2048, %s67, [#allocation9], 256, 256, 16
    $region21: #{tpu_custom_call.1} parent=1 // pred_fallthru
      _
    // Predicated region
    $region22: #{tpu_custom_call.1} parent=1 // pred_check
      _
    $region23: #{tpu_custom_call.1} parent=1 // pred_check_branch
      %74 = sbr.rel (0) target = $region25
    $region24: #{tpu_custom_call.1} parent=1 // pred_region
      %s76 = ssub.s32 2048, 2048
      %77 = vsyncadd [#allocation9], %s76
      %s78 = sshll.u32 [#allocation10], 4
      %s79 = int_to_ptr.vmem [resolvable:$true] %s78
      %84 = dma.hbm_to_vmem [thread:$0]  %s5, 2048, %s79, [#allocation9], 256, 256, 16
    $region25: #{tpu_custom_call.1} parent=1 // pred_fallthru
      _
    // Predicated region
    $region26: #{tpu_custom_call.1} parent=1 // pred_check
      _
    $region27: #{tpu_custom_call.1} parent=1 // pred_check_branch
      %86 = sbr.rel (0) target = $region29
    $region28: #{tpu_custom_call.1} parent=1 // pred_region
      _
    $region29: #{tpu_custom_call.1} parent=1 // pred_fallthru
      _
    // Predicated region
    $region30: #{tpu_custom_call.1} parent=1 // pred_check
      _
    $region31: #{tpu_custom_call.1} parent=1 // pred_check_branch
      %88 = sbr.rel (0) target = $region33
    $region32: #{tpu_custom_call.1} parent=1 // pred_region
      _
    $region33: #{tpu_custom_call.1} parent=1 // pred_fallthru
      _
    // Predicated region
    $region34: #{tpu_custom_call.1} parent=1 // pred_check
      _
    $region35: #{tpu_custom_call.1} parent=1 // pred_check_branch
      %90 = sbr.rel (0) target = $region37
    $region36: #{tpu_custom_call.1} parent=1 // pred_region
      %s92 = ssub.s32 1024, 1024
      %93 = vsyncadd [#allocation12], %s92
      %s94 = sshll.u32 [#allocation11], 4
      %s95 = int_to_ptr.vmem [resolvable:$true] %s94
      %100 = dma.hbm_to_vmem [thread:$0]  %s8, 1024, %s95, [#allocation12], 128, 128, 8
    $region37: #{tpu_custom_call.1} parent=1 // pred_fallthru
      _
    // Predicated region
    $region38: #{tpu_custom_call.1} parent=1 // pred_check
      _
    $region39: #{tpu_custom_call.1} parent=1 // pred_check_branch
      %102 = sbr.rel (0) target = $region41
    $region40: #{tpu_custom_call.1} parent=1 // pred_region
      _
    $region41: #{tpu_custom_call.1} parent=1 // pred_fallthru
      _
    // Predicated region
    $region42: #{tpu_custom_call.1} parent=1 // pred_check
      _
    $region43: #{tpu_custom_call.1} parent=1 // pred_check_branch
      %104 = sbr.rel (0) target = $region45
    $region44: #{tpu_custom_call.1} parent=1 // pred_region
      %105 = dma.done [#allocation3], 512
    $region45: #{tpu_custom_call.1} parent=1 // pred_fallthru
      _
    // Predicated region
    $region46: #{tpu_custom_call.1} parent=1 // pred_check
      _
    $region47: #{tpu_custom_call.1} parent=1 // pred_check_branch
      %107 = sbr.rel (0) target = $region49
    $region48: #{tpu_custom_call.1} parent=1 // pred_region
      %108 = dma.done [#allocation6], 512
    $region49: #{tpu_custom_call.1} parent=1 // pred_fallthru
      _
    // Predicated region
    $region50: #{tpu_custom_call.1} parent=1 // pred_check
      _
    $region51: #{tpu_custom_call.1} parent=1 // pred_check_branch
      %110 = sbr.rel (0) target = $region53
    $region52: #{tpu_custom_call.1} parent=1 // pred_region
      %111 = dma.done [#allocation6], 512
    $region53: #{tpu_custom_call.1} parent=1 // pred_fallthru
      _
    // Predicated region
    $region54: #{tpu_custom_call.1} parent=1 // pred_check
      _
    $region55: #{tpu_custom_call.1} parent=1 // pred_check_branch
      %113 = sbr.rel (0) target = $region57
    $region56: #{tpu_custom_call.1} parent=1 // pred_region
      %114 = dma.done [#allocation9], 2048
    $region57: #{tpu_custom_call.1} parent=1 // pred_fallthru
      _
    // Predicated region
    $region58: #{tpu_custom_call.1} parent=1 // pred_check
      _
    $region59: #{tpu_custom_call.1} parent=1 // pred_check_branch
      %116 = sbr.rel (0) target = $region61
    $region60: #{tpu_custom_call.1} parent=1 // pred_region
      %117 = dma.done [#allocation9], 2048
    $region61: #{tpu_custom_call.1} parent=1 // pred_fallthru
      _
    // Predicated region
    $region62: #{tpu_custom_call.1} parent=1 // pred_check
      _
    $region63: #{tpu_custom_call.1} parent=1 // pred_check_branch
      %119 = sbr.rel (0) target = $region65
    $region64: #{tpu_custom_call.1} parent=1 // pred_region
      %120 = dma.done [#allocation12], 1024
    $region65: #{tpu_custom_call.1} parent=1 // pred_fallthru
      _
    %v121 = vld [vmem:[#allocation2] sm:$0xff]
    %v122 = vld [vmem:[#allocation2 + $0x8] sm:$0xff]
    %v123 = vld [vmem:[#allocation2 + $0x10] sm:$0xff]
    %v124 = vld [vmem:[#allocation2 + $0x18] sm:$0xff]
    %v125 = vld [vmem:[#allocation5] sm:$0xff]
    %v126 = vld [vmem:[#allocation5 + $0x8] sm:$0xff]
    %v127 = vld [vmem:[#allocation5 + $0x10] sm:$0xff]
    %v128 = vld [vmem:[#allocation5 + $0x18] sm:$0xff]
    %v129 = vld [vmem:[#allocation7] sm:$0xff]
    %v130 = vld [vmem:[#allocation7 + $0x8] sm:$0xff]
    %v131 = vld [vmem:[#allocation7 + $0x10] sm:$0xff]
    %v132 = vld [vmem:[#allocation7 + $0x18] sm:$0xff]
    %v133 = vld [vmem:[%s3] sm:$0x1]
    %v135 = vlaneseq
    %v136 = vshrl.u32 %v135, 7
    %v137 = vsub.s32 0, %v136
    %v138 = vrot.slane %v133, %v137
    %vm140 = vcmask 261120
    %v142 = vsel %vm140, %v121, 0
    %v145 = vsel %vm140, %v122, 0
    %v148 = vsel %vm140, %v123, 0
    %v151 = vsel %vm140, %v124, 0
    %153 = vmatprep.subr.mxu0 0.0
    %154 = vmatpush1.msra.mxu0 %v129
    %155 = vmatprep.subr.mxu0 0.0
    %156 = vmatpush1.msra.mxu0 %v130
    %157 = vmatprep.subr.mxu0 0.0
    %158 = vmatpush1.msra.mxu0 %v131
    %159 = vmatprep.subr.mxu0 0.0
    %160 = vmatpush1.msra.mxu0 %v132
    %161 = vmatprep.subr.mxu0 0.0
    %162 = vmatpush1.msra.mxu0 0.0
    %163 = vmatprep.subr.mxu0 0.0
    %164 = vmatpush1.msra.mxu0 0.0
    %165 = vmatprep.subr.mxu0 0.0
    %166 = vmatpush1.msra.mxu0 0.0
    %167 = vmatprep.subr.mxu0 0.0
    %168 = vmatpush1.msra.mxu0 0.0
    %169 = vmatprep.subr.mxu0 0.0
    %170 = vmatpush1.msra.mxu0 0.0
    %171 = vmatprep.subr.mxu0 0.0
    %172 = vmatpush1.msra.mxu0 0.0
    %173 = vmatprep.subr.mxu0 0.0
    %174 = vmatpush1.msra.mxu0 0.0
    %175 = vmatprep.subr.mxu0 0.0
    %176 = vmatpush1.msra.mxu0 0.0
    %177 = vmatprep.subr.mxu0 0.0
    %178 = vmatpush1.msra.mxu0 0.0
    %179 = vmatprep.subr.mxu0 0.0
    %180 = vmatpush1.msra.mxu0 0.0
    %181 = vmatprep.subr.mxu0 0.0
    %182 = vmatpush1.msra.mxu0 0.0
    %183 = vmatprep.subr.mxu0 0.0
    %184 = vmatpush1.msra.mxu0 0.0
    %185 = vmatprep.subr.mxu0 0.0
    %186 = vmatpush1.msra.mxu0 0.0
    %187 = vmatprep.subr.mxu0 0.0
    %188 = vmatpush1.msra.mxu0 0.0
    %189 = vmatprep.subr.mxu0 0.0
    %190 = vmatpush1.msra.mxu0 0.0
    %191 = vmatprep.subr.mxu0 0.0
    %192 = vmatpush1.msra.mxu0 0.0
    %193 = vmatprep.subr.mxu0 0.0
    %194 = vmatpush1.msra.mxu0 0.0
    %195 = vmatprep.subr.mxu0 0.0
    %196 = vmatpush1.msra.mxu0 0.0
    %197 = vmatprep.subr.mxu0 0.0
    %198 = vmatpush1.msra.mxu0 0.0
    %199 = vmatprep.subr.mxu0 0.0
    %200 = vmatpush1.msra.mxu0 0.0
    %201 = vmatprep.subr.mxu0 0.0
    %202 = vmatpush1.msra.mxu0 0.0
    %203 = vmatprep.subr.mxu0 0.0
    %204 = vmatpush1.msra.mxu0 0.0
    %205 = vmatprep.subr.mxu0 0.0
    %206 = vmatpush1.msra.mxu0 0.0
    %207 = vmatprep.subr.mxu0 0.0
    %208 = vmatpush1.msra.mxu0 0.0
    %209 = vmatprep.subr.mxu0 0.0
    %210 = vmatpush1.msra.mxu0 0.0
    %211 = vmatprep.subr.mxu0 0.0
    %212 = vmatpush1.msra.mxu0 0.0
    %213 = vmatprep.subr.mxu0 0.0
    %214 = vmatpush1.msra.mxu0 0.0
    %215 = vmatprep.subr.mxu0 0.0
    %216 = vmatpush1.msra.mxu0 0.0
    %217 = vmatprep.mubr.f32.mxu0 0.0
    %218 = vmatmul.mubr.f32.gmra.mrb[0].mxu0 %v142
    %v219 = vpop.f32.mrb[0].mxu0
    %v220 = vadd.f32 %v138, %v219
    %v221 = vpop.f32.mrb[0].mxu0
    %222 = vmatprep.mubr.f32.mxu0 0.0
    %223 = vmatmul.mubr.f32.gmra.mrb[0].mxu0 %v145
    %v224 = vpop.f32.mrb[0].mxu0
    %v225 = vadd.f32 %v138, %v224
    %v226 = vpop.f32.mrb[0].mxu0
    %227 = vmatprep.mubr.f32.mxu0 0.0
    %228 = vmatmul.mubr.f32.gmra.mrb[0].mxu0 %v148
    %v229 = vpop.f32.mrb[0].mxu0
    %v230 = vadd.f32 %v138, %v229
    %v231 = vpop.f32.mrb[0].mxu0
    %232 = vmatprep.mubr.f32.mxu0 0.0
    %233 = vmatmul.mubr.f32.gmra.mrb[0].mxu0 %v151
    %v234 = vpop.f32.mrb[0].mxu0
    %v235 = vadd.f32 %v138, %v234
    %v236 = vpop.f32.mrb[0].mxu0
    %237 = vdwg.mxu0
    %v238 = vmax.f32 %v220, 0.0
    %v239 = vmax.f32 %v225, 0.0
    %v240 = vmax.f32 %v230, 0.0
    %v241 = vmax.f32 %v235, 0.0
    %v242 = vld [vmem:[#allocation8] sm:$0xff]
    %v243 = vld [vmem:[#allocation8 + $0x8] sm:$0xff]
    %v244 = vld [vmem:[#allocation8 + $0x10] sm:$0xff]
    %v245 = vld [vmem:[#allocation8 + $0x18] sm:$0xff]
    %v246 = vld [vmem:[#allocation8 + $0x20] sm:$0xff]
    %v247 = vld [vmem:[#allocation8 + $0x28] sm:$0xff]
    %v248 = vld [vmem:[#allocation8 + $0x30] sm:$0xff]
    %v249 = vld [vmem:[#allocation8 + $0x38] sm:$0xff]
    %v250 = vld [vmem:[#allocation8 + $0x40] sm:$0xff]
    %v251 = vld [vmem:[#allocation8 + $0x48] sm:$0xff]
    %v252 = vld [vmem:[#allocation8 + $0x50] sm:$0xff]
    %v253 = vld [vmem:[#allocation8 + $0x58] sm:$0xff]
    %v254 = vld [vmem:[#allocation8 + $0x60] sm:$0xff]
    %v255 = vld [vmem:[#allocation8 + $0x68] sm:$0xff]
    %v256 = vld [vmem:[#allocation8 + $0x70] sm:$0xff]
    %v257 = vld [vmem:[#allocation8 + $0x78] sm:$0xff]
    %v258 = vld [vmem:[%s6] sm:$0x3]
    %v260 = vlaneseq
    %v261 = vshrl.u32 %v260, 7
    %v262 = vsub.s32 0, %v261
    %v263 = vrot.slane %v258, %v262
    %v264 = vlaneseq
    %v265 = vshrl.u32 %v264, 7
    %v266 = vsub.s32 1, %v265
    %v267 = vrot.slane %v258, %v266
    %vm270 = vcmask 523264
    %v272 = vsel %vm270, %v238, 0
    %v275 = vsel %vm270, %v239, 0
    %v278 = vsel %vm270, %v240, 0
    %v281 = vsel %vm270, %v241, 0
    %283 = vmatprep.subr.mxu0 %v243
    %284 = vmatpush1.msra.mxu0 %v242
    %285 = vmatprep.subr.mxu0 %v245
    %286 = vmatpush1.msra.mxu0 %v244
    %287 = vmatprep.subr.mxu0 %v247
    %288 = vmatpush1.msra.mxu0 %v246
    %289 = vmatprep.subr.mxu0 %v249
    %290 = vmatpush1.msra.mxu0 %v248
    %291 = vmatprep.subr.mxu0 %v251
    %292 = vmatpush1.msra.mxu0 %v250
    %293 = vmatprep.subr.mxu0 %v253
    %294 = vmatpush1.msra.mxu0 %v252
    %295 = vmatprep.subr.mxu0 %v255
    %296 = vmatpush1.msra.mxu0 %v254
    %297 = vmatprep.subr.mxu0 %v257
    %298 = vmatpush1.msra.mxu0 %v256
    %299 = vmatprep.subr.mxu0 0.0
    %300 = vmatpush1.msra.mxu0 0.0
    %301 = vmatprep.subr.mxu0 0.0
    %302 = vmatpush1.msra.mxu0 0.0
    %303 = vmatprep.subr.mxu0 0.0
    %304 = vmatpush1.msra.mxu0 0.0
    %305 = vmatprep.subr.mxu0 0.0
    %306 = vmatpush1.msra.mxu0 0.0
    %307 = vmatprep.subr.mxu0 0.0
    %308 = vmatpush1.msra.mxu0 0.0
    %309 = vmatprep.subr.mxu0 0.0
    %310 = vmatpush1.msra.mxu0 0.0
    %311 = vmatprep.subr.mxu0 0.0
    %312 = vmatpush1.msra.mxu0 0.0
    %313 = vmatprep.subr.mxu0 0.0
    %314 = vmatpush1.msra.mxu0 0.0
    %315 = vmatprep.subr.mxu0 0.0
    %316 = vmatpush1.msra.mxu0 0.0
    %317 = vmatprep.subr.mxu0 0.0
    %318 = vmatpush1.msra.mxu0 0.0
    %319 = vmatprep.subr.mxu0 0.0
    %320 = vmatpush1.msra.mxu0 0.0
    %321 = vmatprep.subr.mxu0 0.0
    %322 = vmatpush1.msra.mxu0 0.0
    %323 = vmatprep.subr.mxu0 0.0
    %324 = vmatpush1.msra.mxu0 0.0
    %325 = vmatprep.subr.mxu0 0.0
    %326 = vmatpush1.msra.mxu0 0.0
    %327 = vmatprep.subr.mxu0 0.0
    %328 = vmatpush1.msra.mxu0 0.0
    %329 = vmatprep.subr.mxu0 0.0
    %330 = vmatpush1.msra.mxu0 0.0
    %331 = vmatprep.subr.mxu0 0.0
    %332 = vmatpush1.msra.mxu0 0.0
    %333 = vmatprep.subr.mxu0 0.0
    %334 = vmatpush1.msra.mxu0 0.0
    %335 = vmatprep.subr.mxu0 0.0
    %336 = vmatpush1.msra.mxu0 0.0
    %337 = vmatprep.subr.mxu0 0.0
    %338 = vmatpush1.msra.mxu0 0.0
    %339 = vmatprep.subr.mxu0 0.0
    %340 = vmatpush1.msra.mxu0 0.0
    %341 = vmatprep.subr.mxu0 0.0
    %342 = vmatpush1.msra.mxu0 0.0
    %343 = vmatprep.subr.mxu0 0.0
    %344 = vmatpush1.msra.mxu0 0.0
    %345 = vmatprep.subr.mxu0 0.0
    %346 = vmatpush1.msra.mxu0 0.0
    %347 = vmatprep.mubr.f32.mxu0 0.0
    %348 = vmatmul.mubr.f32.gmra.mrb[0].mxu0 %v272
    %v349 = vpop.f32.mrb[0].mxu0
    %v350 = vadd.f32 %v263, %v349
    %v351 = vpop.f32.mrb[0].mxu0
    %v352 = vadd.f32 %v267, %v351
    %353 = vmatprep.mubr.f32.mxu0 0.0
    %354 = vmatmul.mubr.f32.gmra.mrb[0].mxu0 %v275
    %v355 = vpop.f32.mrb[0].mxu0
    %v356 = vadd.f32 %v263, %v355
    %v357 = vpop.f32.mrb[0].mxu0
    %v358 = vadd.f32 %v267, %v357
    %359 = vmatprep.mubr.f32.mxu0 0.0
    %360 = vmatmul.mubr.f32.gmra.mrb[0].mxu0 %v278
    %v361 = vpop.f32.mrb[0].mxu0
    %v362 = vadd.f32 %v263, %v361
    %v363 = vpop.f32.mrb[0].mxu0
    %v364 = vadd.f32 %v267, %v363
    %365 = vmatprep.mubr.f32.mxu0 0.0
    %366 = vmatmul.mubr.f32.gmra.mrb[0].mxu0 %v281
    %v367 = vpop.f32.mrb[0].mxu0
    %v368 = vadd.f32 %v263, %v367
    %v369 = vpop.f32.mrb[0].mxu0
    %v370 = vadd.f32 %v267, %v369
    %371 = vdwg.mxu0
    %v372 = vld [vmem:[#allocation10] sm:$0xff]
    %v373 = vld [vmem:[#allocation10 + $0x8] sm:$0xff]
    %v374 = vld [vmem:[#allocation10 + $0x10] sm:$0xff]
    %v375 = vld [vmem:[#allocation10 + $0x18] sm:$0xff]
    %v376 = vld [vmem:[#allocation10 + $0x20] sm:$0xff]
    %v377 = vld [vmem:[#allocation10 + $0x28] sm:$0xff]
    %v378 = vld [vmem:[#allocation10 + $0x30] sm:$0xff]
    %v379 = vld [vmem:[#allocation10 + $0x38] sm:$0xff]
    %v380 = vld [vmem:[#allocation10 + $0x40] sm:$0xff]
    %v381 = vld [vmem:[#allocation10 + $0x48] sm:$0xff]
    %v382 = vld [vmem:[#allocation10 + $0x50] sm:$0xff]
    %v383 = vld [vmem:[#allocation10 + $0x58] sm:$0xff]
    %v384 = vld [vmem:[#allocation10 + $0x60] sm:$0xff]
    %v385 = vld [vmem:[#allocation10 + $0x68] sm:$0xff]
    %v386 = vld [vmem:[#allocation10 + $0x70] sm:$0xff]
    %v387 = vld [vmem:[#allocation10 + $0x78] sm:$0xff]
    %v389 = vsel %vm270, %v125, 0
    %v392 = vsel %vm270, %v126, 0
    %v395 = vsel %vm270, %v127, 0
    %v398 = vsel %vm270, %v128, 0
    %400 = vmatprep.subr.mxu0 %v373
    %401 = vmatpush1.msra.mxu0 %v372
    %402 = vmatprep.subr.mxu0 %v375
    %403 = vmatpush1.msra.mxu0 %v374
    %404 = vmatprep.subr.mxu0 %v377
    %405 = vmatpush1.msra.mxu0 %v376
    %406 = vmatprep.subr.mxu0 %v379
    %407 = vmatpush1.msra.mxu0 %v378
    %408 = vmatprep.subr.mxu0 %v381
    %409 = vmatpush1.msra.mxu0 %v380
    %410 = vmatprep.subr.mxu0 %v383
    %411 = vmatpush1.msra.mxu0 %v382
    %412 = vmatprep.subr.mxu0 %v385
    %413 = vmatpush1.msra.mxu0 %v384
    %414 = vmatprep.subr.mxu0 %v387
    %415 = vmatpush1.msra.mxu0 %v386
    %416 = vmatprep.subr.mxu0 0.0
    %417 = vmatpush1.msra.mxu0 0.0
    %418 = vmatprep.subr.mxu0 0.0
    %419 = vmatpush1.msra.mxu0 0.0
    %420 = vmatprep.subr.mxu0 0.0
    %421 = vmatpush1.msra.mxu0 0.0
    %422 = vmatprep.subr.mxu0 0.0
    %423 = vmatpush1.msra.mxu0 0.0
    %424 = vmatprep.subr.mxu0 0.0
    %425 = vmatpush1.msra.mxu0 0.0
    %426 = vmatprep.subr.mxu0 0.0
    %427 = vmatpush1.msra.mxu0 0.0
    %428 = vmatprep.subr.mxu0 0.0
    %429 = vmatpush1.msra.mxu0 0.0
    %430 = vmatprep.subr.mxu0 0.0
    %431 = vmatpush1.msra.mxu0 0.0
    %432 = vmatprep.subr.mxu0 0.0
    %433 = vmatpush1.msra.mxu0 0.0
    %434 = vmatprep.subr.mxu0 0.0
    %435 = vmatpush1.msra.mxu0 0.0
    %436 = vmatprep.subr.mxu0 0.0
    %437 = vmatpush1.msra.mxu0 0.0
    %438 = vmatprep.subr.mxu0 0.0
    %439 = vmatpush1.msra.mxu0 0.0
    %440 = vmatprep.subr.mxu0 0.0
    %441 = vmatpush1.msra.mxu0 0.0
    %442 = vmatprep.subr.mxu0 0.0
    %443 = vmatpush1.msra.mxu0 0.0
    %444 = vmatprep.subr.mxu0 0.0
    %445 = vmatpush1.msra.mxu0 0.0
    %446 = vmatprep.subr.mxu0 0.0
    %447 = vmatpush1.msra.mxu0 0.0
    %448 = vmatprep.subr.mxu0 0.0
    %449 = vmatpush1.msra.mxu0 0.0
    %450 = vmatprep.subr.mxu0 0.0
    %451 = vmatpush1.msra.mxu0 0.0
    %452 = vmatprep.subr.mxu0 0.0
    %453 = vmatpush1.msra.mxu0 0.0
    %454 = vmatprep.subr.mxu0 0.0
    %455 = vmatpush1.msra.mxu0 0.0
    %456 = vmatprep.subr.mxu0 0.0
    %457 = vmatpush1.msra.mxu0 0.0
    %458 = vmatprep.subr.mxu0 0.0
    %459 = vmatpush1.msra.mxu0 0.0
    %460 = vmatprep.subr.mxu0 0.0
    %461 = vmatpush1.msra.mxu0 0.0
    %462 = vmatprep.subr.mxu0 0.0
    %463 = vmatpush1.msra.mxu0 0.0
    %464 = vmatprep.mubr.f32.mxu0 0.0
    %465 = vmatmul.mubr.f32.gmra.mrb[0].mxu0 %v389
    %v466 = vpop.f32.mrb[0].mxu0
    %v467 = vadd.f32 0.0, %v466
    %v468 = vpop.f32.mrb[0].mxu0
    %v469 = vadd.f32 0.0, %v468
    %470 = vmatprep.mubr.f32.mxu0 0.0
    %471 = vmatmul.mubr.f32.gmra.mrb[0].mxu0 %v392
    %v472 = vpop.f32.mrb[0].mxu0
    %v473 = vadd.f32 0.0, %v472
    %v474 = vpop.f32.mrb[0].mxu0
    %v475 = vadd.f32 0.0, %v474
    %476 = vmatprep.mubr.f32.mxu0 0.0
    %477 = vmatmul.mubr.f32.gmra.mrb[0].mxu0 %v395
    %v478 = vpop.f32.mrb[0].mxu0
    %v479 = vadd.f32 0.0, %v478
    %v480 = vpop.f32.mrb[0].mxu0
    %v481 = vadd.f32 0.0, %v480
    %482 = vmatprep.mubr.f32.mxu0 0.0
    %483 = vmatmul.mubr.f32.gmra.mrb[0].mxu0 %v398
    %v484 = vpop.f32.mrb[0].mxu0
    %v485 = vadd.f32 0.0, %v484
    %v486 = vpop.f32.mrb[0].mxu0
    %v487 = vadd.f32 0.0, %v486
    %488 = vdwg.mxu0
    %v489 = vadd.f32 %v350, %v467
    %v490 = vadd.f32 %v356, %v473
    %v491 = vadd.f32 %v362, %v479
    %v492 = vadd.f32 %v368, %v485
    %v493 = vxor.u32 %v489, 2147483648
    %v494 = vxor.u32 %v490, 2147483648
    %v495 = vxor.u32 %v491, 2147483648
    %v496 = vxor.u32 %v492, 2147483648
    %v497 = vmul.f32 %v493, 1.442695
    %v498 = vpow.pop %v497
    %v499 = vmul.f32 %v494, 1.442695
    %v500 = vpow.pop %v499
    %v501 = vmul.f32 %v495, 1.442695
    %v502 = vpow.pop %v501
    %v503 = vmul.f32 %v496, 1.442695
    %v504 = vpow.pop %v503
    %v505 = vadd.f32 %v498, 1.0
    %v506 = vadd.f32 %v500, 1.0
    %v507 = vadd.f32 %v502, 1.0
    %v508 = vadd.f32 %v504, 1.0
    %v509 = vrcp.pop %v505
    %v510 = vmul.f32 1.0, %v509
    %v511 = vrcp.pop %v506
    %v512 = vmul.f32 1.0, %v511
    %v513 = vrcp.pop %v507
    %v514 = vmul.f32 1.0, %v513
    %v515 = vrcp.pop %v508
    %v516 = vmul.f32 1.0, %v515
    %v517 = vld [vmem:[%s7] sm:$0x1]
    %v519 = vlaneseq
    %v520 = vshrl.u32 %v519, 7
    %v521 = vsub.s32 0, %v520
    %v522 = vrot.slane %v517, %v521
    %v524 = vadd.f32 %v469, %v522
    %v525 = vadd.f32 %v475, %v522
    %v526 = vadd.f32 %v481, %v522
    %v527 = vadd.f32 %v487, %v522
    %v528 = vmul.f32 %v510, %v524
    %v529 = vmul.f32 %v512, %v525
    %v530 = vmul.f32 %v514, %v526
    %v531 = vmul.f32 %v516, %v527
    %v532 = vadd.f32 %v352, %v528
    %v533 = vadd.f32 %v358, %v529
    %v534 = vadd.f32 %v364, %v530
    %v535 = vadd.f32 %v370, %v531
    %v536 = vtanh.pop %v532
    %v537 = vtanh.pop %v533
    %v538 = vtanh.pop %v534
    %v539 = vtanh.pop %v535
    %v540 = vsub.f32 1.0, %v510
    %v541 = vsub.f32 1.0, %v512
    %v542 = vsub.f32 1.0, %v514
    %v543 = vsub.f32 1.0, %v516
    %548 = vrot.lane.b32.xlu0 %v536, 64
    %v549 = vpop.permute.xlu0 %548
    %550 = vrot.lane.b32.xlu0 %v537, 64
    %v551 = vpop.permute.xlu0 %550
    %552 = vrot.lane.b32.xlu0 %v538, 64
    %v553 = vpop.permute.xlu0 %552
    %554 = vrot.lane.b32.xlu0 %v539, 64
    %v555 = vpop.permute.xlu0 %554
    %v560 = vmul.f32 %v540, %v549
    %v561 = vmul.f32 %v541, %v551
    %v562 = vmul.f32 %v542, %v553
    %v563 = vmul.f32 %v543, %v555
    %564 = vrot.lane.b32.xlu0 %v125, 64
    %v565 = vpop.permute.xlu0 %564
    %566 = vrot.lane.b32.xlu0 %v126, 64
    %v567 = vpop.permute.xlu0 %566
    %568 = vrot.lane.b32.xlu0 %v127, 64
    %v569 = vpop.permute.xlu0 %568
    %570 = vrot.lane.b32.xlu0 %v128, 64
    %v571 = vpop.permute.xlu0 %570
    %v576 = vmul.f32 %v510, %v565
    %v577 = vmul.f32 %v512, %v567
    %v578 = vmul.f32 %v514, %v569
    %v579 = vmul.f32 %v516, %v571
    %v580 = vadd.f32 %v560, %v576
    %v581 = vadd.f32 %v561, %v577
    %v582 = vadd.f32 %v562, %v578
    %v583 = vadd.f32 %v563, %v579
    %v584 = vld [vmem:[#allocation11] sm:$0xff]
    %v585 = vld [vmem:[#allocation11 + $0x8] sm:$0xff]
    %v586 = vld [vmem:[#allocation11 + $0x10] sm:$0xff]
    %v587 = vld [vmem:[#allocation11 + $0x18] sm:$0xff]
    %v588 = vld [vmem:[#allocation11 + $0x20] sm:$0xff]
    %v589 = vld [vmem:[#allocation11 + $0x28] sm:$0xff]
    %v590 = vld [vmem:[#allocation11 + $0x30] sm:$0xff]
    %v591 = vld [vmem:[#allocation11 + $0x38] sm:$0xff]
    %v592 = vld [vmem:[%s9] sm:$0x1]
    %v594 = vlaneseq
    %v595 = vshrl.u32 %v594, 7
    %v596 = vsub.s32 0, %v595
    %v597 = vrot.slane %v592, %v596
    %603 = vrot.lane.b32.xlu0 %v580, 64
    %v604 = vpop.permute.xlu0 %603
    %605 = vrot.lane.b32.xlu0 %v581, 64
    %v606 = vpop.permute.xlu0 %605
    %607 = vrot.lane.b32.xlu0 %v582, 64
    %v608 = vpop.permute.xlu0 %607
    %609 = vrot.lane.b32.xlu0 %v583, 64
    %v610 = vpop.permute.xlu0 %609
    %v611 = vsel %vm270, %v604, 0
    %v613 = vsel %vm270, %v606, 0
    %v615 = vsel %vm270, %v608, 0
    %v617 = vsel %vm270, %v610, 0
    %619 = vmatprep.subr.mxu0 0.0
    %620 = vmatpush1.msra.mxu0 %v584
    %621 = vmatprep.subr.mxu0 0.0
    %622 = vmatpush1.msra.mxu0 %v585
    %623 = vmatprep.subr.mxu0 0.0
    %624 = vmatpush1.msra.mxu0 %v586
    %625 = vmatprep.subr.mxu0 0.0
    %626 = vmatpush1.msra.mxu0 %v587
    %627 = vmatprep.subr.mxu0 0.0
    %628 = vmatpush1.msra.mxu0 %v588
    %629 = vmatprep.subr.mxu0 0.0
    %630 = vmatpush1.msra.mxu0 %v589
    %631 = vmatprep.subr.mxu0 0.0
    %632 = vmatpush1.msra.mxu0 %v590
    %633 = vmatprep.subr.mxu0 0.0
    %634 = vmatpush1.msra.mxu0 %v591
    %635 = vmatprep.subr.mxu0 0.0
    %636 = vmatpush1.msra.mxu0 0.0
    %637 = vmatprep.subr.mxu0 0.0
    %638 = vmatpush1.msra.mxu0 0.0
    %639 = vmatprep.subr.mxu0 0.0
    %640 = vmatpush1.msra.mxu0 0.0
    %641 = vmatprep.subr.mxu0 0.0
    %642 = vmatpush1.msra.mxu0 0.0
    %643 = vmatprep.subr.mxu0 0.0
    %644 = vmatpush1.msra.mxu0 0.0
    %645 = vmatprep.subr.mxu0 0.0
    %646 = vmatpush1.msra.mxu0 0.0
    %647 = vmatprep.subr.mxu0 0.0
    %648 = vmatpush1.msra.mxu0 0.0
    %649 = vmatprep.subr.mxu0 0.0
    %650 = vmatpush1.msra.mxu0 0.0
    %651 = vmatprep.subr.mxu0 0.0
    %652 = vmatpush1.msra.mxu0 0.0
    %653 = vmatprep.subr.mxu0 0.0
    %654 = vmatpush1.msra.mxu0 0.0
    %655 = vmatprep.subr.mxu0 0.0
    %656 = vmatpush1.msra.mxu0 0.0
    %657 = vmatprep.subr.mxu0 0.0
    %658 = vmatpush1.msra.mxu0 0.0
    %659 = vmatprep.subr.mxu0 0.0
    %660 = vmatpush1.msra.mxu0 0.0
    %661 = vmatprep.subr.mxu0 0.0
    %662 = vmatpush1.msra.mxu0 0.0
    %663 = vmatprep.subr.mxu0 0.0
    %664 = vmatpush1.msra.mxu0 0.0
    %665 = vmatprep.subr.mxu0 0.0
    %666 = vmatpush1.msra.mxu0 0.0
    %667 = vmatprep.subr.mxu0 0.0
    %668 = vmatpush1.msra.mxu0 0.0
    %669 = vmatprep.subr.mxu0 0.0
    %670 = vmatpush1.msra.mxu0 0.0
    %671 = vmatprep.subr.mxu0 0.0
    %672 = vmatpush1.msra.mxu0 0.0
    %673 = vmatprep.subr.mxu0 0.0
    %674 = vmatpush1.msra.mxu0 0.0
    %675 = vmatprep.subr.mxu0 0.0
    %676 = vmatpush1.msra.mxu0 0.0
    %677 = vmatprep.subr.mxu0 0.0
    %678 = vmatpush1.msra.mxu0 0.0
    %679 = vmatprep.subr.mxu0 0.0
    %680 = vmatpush1.msra.mxu0 0.0
    %681 = vmatprep.subr.mxu0 0.0
    %682 = vmatpush1.msra.mxu0 0.0
    %683 = vmatprep.mubr.f32.mxu0 0.0
    %684 = vmatmul.mubr.f32.gmra.mrb[0].mxu0 %v611
    %v685 = vpop.f32.mrb[0].mxu0
    %v686 = vadd.f32 %v597, %v685
    %v687 = vpop.f32.mrb[0].mxu0
    %688 = vmatprep.mubr.f32.mxu0 0.0
    %689 = vmatmul.mubr.f32.gmra.mrb[0].mxu0 %v613
    %v690 = vpop.f32.mrb[0].mxu0
    %v691 = vadd.f32 %v597, %v690
    %v692 = vpop.f32.mrb[0].mxu0
    %693 = vmatprep.mubr.f32.mxu0 0.0
    %694 = vmatmul.mubr.f32.gmra.mrb[0].mxu0 %v615
    %v695 = vpop.f32.mrb[0].mxu0
    %v696 = vadd.f32 %v597, %v695
    %v697 = vpop.f32.mrb[0].mxu0
    %698 = vmatprep.mubr.f32.mxu0 0.0
    %699 = vmatmul.mubr.f32.gmra.mrb[0].mxu0 %v617
    %v700 = vpop.f32.mrb[0].mxu0
    %v701 = vadd.f32 %v597, %v700
    %v702 = vpop.f32.mrb[0].mxu0
    %703 = vdwg.mxu0
    %704 = vst [vmem:[#allocation13] sm:$0xff] %v686
    %705 = vst [vmem:[#allocation13 + $0x8] sm:$0xff] %v691
    %706 = vst [vmem:[#allocation13 + $0x10] sm:$0xff] %v696
    %707 = vst [vmem:[#allocation13 + $0x18] sm:$0xff] %v701
    %712 = vst.msk [vmem:[#allocation14] sm:$0xff] %vm270, %v604
    %713 = vst.msk [vmem:[#allocation14 + $0x8] sm:$0xff] %vm270, %v606
    %714 = vst.msk [vmem:[#allocation14 + $0x10] sm:$0xff] %vm270, %v608
    %715 = vst.msk [vmem:[#allocation14 + $0x18] sm:$0xff] %vm270, %v610
    // Predicated region
    $region66: #{tpu_custom_call.1} parent=1 // pred_check
      _
    $region67: #{tpu_custom_call.1} parent=1 // pred_check_branch
      %717 = sbr.rel (0) target = $region69
    $region68: #{tpu_custom_call.1} parent=1 // pred_region
      %s719 = ssub.s32 512, 512
      %720 = vsyncadd [#allocation4], %s719
      %s721 = sshll.u32 [#allocation13], 4
      %s722 = int_to_ptr.vmem [resolvable:$true] %s721
      %727 = dma.vmem_to_hbm [thread:$0]  %s722, 512, %s10, [#allocation4], 128, 128, 8
    $region69: #{tpu_custom_call.1} parent=1 // pred_fallthru
      _
    // Predicated region
    $region70: #{tpu_custom_call.1} parent=1 // pred_check
      _
    $region71: #{tpu_custom_call.1} parent=1 // pred_check_branch
      %729 = sbr.rel (0) target = $region73
    $region72: #{tpu_custom_call.1} parent=1 // pred_region
      %s731 = ssub.s32 512, 512
      %732 = vsyncadd [#allocation15], %s731
      %s733 = sshll.u32 [#allocation14], 4
      %s734 = int_to_ptr.vmem [resolvable:$true] %s733
      %739 = dma.vmem_to_hbm [thread:$0]  %s734, 512, %s11, [#allocation15], 128, 128, 8
    $region73: #{tpu_custom_call.1} parent=1 // pred_fallthru
      _
    // Predicated region
    $region74: #{tpu_custom_call.1} parent=1 // pred_check
      _
    $region75: #{tpu_custom_call.1} parent=1 // pred_check_branch
      %741 = sbr.rel (0) target = $region77
    $region76: #{tpu_custom_call.1} parent=1 // pred_region
      %742 = dma.done [#allocation4], 512
    $region77: #{tpu_custom_call.1} parent=1 // pred_fallthru
      _
    // Predicated region
    $region78: #{tpu_custom_call.1} parent=1 // pred_check
      _
    $region79: #{tpu_custom_call.1} parent=1 // pred_check_branch
      %744 = sbr.rel (0) target = $region81
    $region80: #{tpu_custom_call.1} parent=1 // pred_region
      %745 = dma.done [#allocation15], 512
    $region81: #{tpu_custom_call.1} parent=1 // pred_fallthru
      _
    %746 = vsyncpa [#allocation3], 1
    %747 = vsyncpa [#allocation6], 1
    %748 = vsyncpa [#allocation9], 1
    %749 = vsyncpa [#allocation12], 1
    %750 = vsyncpa [#allocation4], 1
    %751 = vsyncpa [#allocation15], 1

</llo_original>
